<compile_context>
chip_gen: v7x
topology: tpu7x:2x2x1
jax: 0.10.0
libtpu: 0.0.40
codegen_flags: <defaults>
</compile_context>

<pallas_src>
import functools

import jax
import jax.numpy as jnp
from jax import lax
from jax.experimental import pallas as pl
from jax.experimental.pallas import tpu as pltpu

SLOPE = 0.2  # LeakyReLU negative slope used throughout CIC / LPFA


def _leaky(y, slope=SLOPE):
    # For 0 < slope < 1, max(y, slope*y) == LeakyReLU(y).
    return jnp.maximum(y, slope * y)


# ----------------------------------------------------------------------------- kernels

def _conv_bn_act_kernel(x_ref, w_ref, b_ref, o_ref, *, slope):
    # 1x1 conv (bf16 MXU matmul) + folded-BN bias + LeakyReLU, one (batch, N-tile).
    y = jnp.dot(w_ref[...], x_ref[0], preferred_element_type=jnp.float32)
    y = y + b_ref[...]
    y = jnp.maximum(y, slope * y)
    o_ref[0] = y.astype(o_ref.dtype)


def _lpfa_conv2_kernel(nx_ref, nf_ref, xyz_ref, h_ref, x_ref,
                       wnd_ref, wcd_ref, bxyz_ref,
                       wm1_ref, bm1_ref, wm2_ref, bm2_ref,
                       w2_ref, b2_ref, ws_ref, bs_ref,
                       o_ref, acc_ref, base_ref, sc_ref,
                       *, k, kc, n, slope):
    # Fused LPFA (xyz2feature fold + residual + 2-layer mlp + mean-over-k)
    # + conv2 + shortcut + final LeakyReLU.  Grid = (B, k//kc); the neighbourhood
    # axis is the innermost reduction, all per-point state lives in VMEM.
    ki = pl.program_id(1)
    n_steps = k // kc

    @pl.when(ki == 0)
    def _():
        # k-invariant part of xyz2feature ((W_ctr - W_diff) @ xyz + b), fused with the
        # "- h" of the neighbour-feature residual; replicated across the kc lane slabs
        # once so the per-step add is a single vadd over the (planes, kc*N) tile.
        ctr = jnp.dot(wcd_ref[...], xyz_ref[0], preferred_element_type=jnp.float32)
        base = ctr + bxyz_ref[...] - h_ref[0].astype(jnp.float32)
        base_ref[...] = jnp.concatenate([base] * kc, axis=-1)
        # k-invariant shortcut conv: compute once, overlapping the prologue DMAs.
        sc_ref[...] = jnp.dot(ws_ref[...], x_ref[0],
                              preferred_element_type=jnp.float32) + bs_ref[...]
        acc_ref[...] = jnp.zeros_like(acc_ref)

    # Per-neighbour xyz2feature term ((W_nbr + W_diff) @ nbr_xyz, K=3), residual
    # (nbr_f - h via base), LeakyReLU — all over kc*N lanes.
    g = jnp.dot(wnd_ref[...], nx_ref[0], preferred_element_type=jnp.float32)
    g = g + nf_ref[0].astype(jnp.float32) + base_ref[...]
    g = jnp.maximum(g, slope * g)

    # LPFA mlp: 2 x (planes->planes conv + BN bias + LeakyReLU), bf16 at the MXU.
    g = jnp.dot(wm1_ref[...], g.astype(jnp.bfloat16),
                preferred_element_type=jnp.float32) + bm1_ref[...]
    g = jnp.maximum(g, slope * g)
    g = jnp.dot(wm2_ref[...], g.astype(jnp.bfloat16),
                preferred_element_type=jnp.float32) + bm2_ref[...]
    g = jnp.maximum(g, slope * g)

    # Sum the kc neighbour slabs (lane-tile-aligned static slices) into the mean acc.
    s = g[:, 0:n]
    for j in range(1, kc):
        s = s + g[:, j * n:(j + 1) * n]
    acc_ref[...] += s

    # Last step: mean over k, conv2 + BN, add precomputed shortcut, LeakyReLU.
    @pl.when(ki == n_steps - 1)
    def _():
        m = acc_ref[...] * (1.0 / k)
        y = jnp.dot(w2_ref[...], m.astype(jnp.bfloat16),
                    preferred_element_type=jnp.float32) + b2_ref[...]
        y = y + sc_ref[...]
        o_ref[0] = jnp.maximum(y, slope * y).astype(o_ref.dtype)


def _pdist_kernel(q_ref, p_ref, o_ref):
    # knn score for one tile of query points: 2*q.p - |p|^2.  The per-row-constant
    # -|q|^2 term of the true metric is dropped (does not change top-k ordering).
    q = q_ref[0]                                                      # (3, TN)
    p = p_ref[0]                                                      # (3, N)
    inner = lax.dot_general(q, p, (((0,), (0,)), ((), ())),           # no transpose
                            preferred_element_type=jnp.float32)       # (TN, N)
    sq_p = jnp.sum(p * p, axis=0, keepdims=True)                      # (1, N)
    o_ref[0] = (2.0 * inner - sq_p).astype(o_ref.dtype)


# ----------------------------------------------------------------------------- wrappers

def conv1_pallas(x, w, b, *, slope=SLOPE, n_tile=512):
    """conv1: 1x1 conv + folded BN + LeakyReLU.  x: [B, Cin, N] bf16 -> [B, Cout, N] bf16.
    N-tiled so there is a second parallel axis (keeps both v7x TCs busy when B == 1)."""
    B, Cin, N = x.shape
    Cout = w.shape[0]
    tn = N if N <= n_tile else n_tile
    assert N % tn == 0
    return pl.pallas_call(
        functools.partial(_conv_bn_act_kernel, slope=slope),
        out_shape=jax.ShapeDtypeStruct((B, Cout, N), jnp.bfloat16),
        grid=(B, N // tn),
        in_specs=[pl.BlockSpec((1, Cin, tn), lambda b, j: (b, 0, j)),
                  pl.BlockSpec((Cout, Cin), lambda b, j: (0, 0)),
                  pl.BlockSpec((Cout, 1), lambda b, j: (0, 0))],
        out_specs=pl.BlockSpec((1, Cout, tn), lambda b, j: (b, 0, j)),
        compiler_params=pltpu.CompilerParams(
            dimension_semantics=("parallel", "parallel")),
    )(x, w, b)


def lpfa_conv2_pallas(nbr_xyz, nbr_f, xyz_b, h, x, p, *, k, kc=None, slope=SLOPE):
    """Fused LPFA + conv2 + shortcut + LeakyReLU.
      nbr_xyz: [B, 3, k*N] bf16 (k-major slabs, N lane-innermost)
      nbr_f:   [B, planes, k*N] bf16 (gathered conv1 features)
      xyz_b:   [B, 3, N] bf16, h: [B, planes, N] bf16, x: [B, Cin, N] bf16
    Returns [B, out_ch, N] bf16."""
    B, _, KN = nbr_xyz.shape
    N = KN // k
    planes = nbr_f.shape[1]
    Cin = x.shape[1]
    Cout = p["w2"].shape[0]
    if kc is None:
        # KC slabs per grid step (sweepable in {2,4,8}); 4 is safe vreg-wise for
        # planes=32, N=128 and quadruples MXU lane occupancy per weight push.
        kc = 4 if k % 4 == 0 else (2 if k % 2 == 0 else 1)
    assert k % kc == 0 and (kc * N) % 128 == 0

    in_specs = [
        pl.BlockSpec((1, 3, kc * N), lambda b, ki: (b, 0, ki)),        # nbr_xyz slabs
        pl.BlockSpec((1, planes, kc * N), lambda b, ki: (b, 0, ki)),   # nbr_f slabs
        pl.BlockSpec((1, 3, N), lambda b, ki: (b, 0, 0)),              # xyz (resident)
        pl.BlockSpec((1, planes, N), lambda b, ki: (b, 0, 0)),         # h (resident)
        pl.BlockSpec((1, Cin, N), lambda b, ki: (b, 0, 0)),            # x (shortcut)
        pl.BlockSpec((planes, 3), lambda b, ki: (0, 0)),               # W_nbr + W_diff
        pl.BlockSpec((planes, 3), lambda b, ki: (0, 0)),               # W_ctr - W_diff
        pl.BlockSpec((planes, 1), lambda b, ki: (0, 0)),               # bxyz
        pl.BlockSpec((planes, planes), lambda b, ki: (0, 0)),          # wm1'
        pl.BlockSpec((planes, 1), lambda b, ki: (0, 0)),               # bm1
        pl.BlockSpec((planes, planes), lambda b, ki: (0, 0)),          # wm2'
        pl.BlockSpec((planes, 1), lambda b, ki: (0, 0)),               # bm2
        pl.BlockSpec((Cout, planes), lambda b, ki: (0, 0)),            # w2'
        pl.BlockSpec((Cout, 1), lambda b, ki: (0, 0)),                 # b2
        pl.BlockSpec((Cout, Cin), lambda b, ki: (0, 0)),               # ws'
        pl.BlockSpec((Cout, 1), lambda b, ki: (0, 0)),                 # bs
    ]
    return pl.pallas_call(
        functools.partial(_lpfa_conv2_kernel, k=k, kc=kc, n=N, slope=slope),
        out_shape=jax.ShapeDtypeStruct((B, Cout, N), jnp.bfloat16),
        grid=(B, k // kc),
        in_specs=in_specs,
        out_specs=pl.BlockSpec((1, Cout, N), lambda b, ki: (b, 0, 0)),
        scratch_shapes=[pltpu.VMEM((planes, N), jnp.float32),          # mean acc
                        pltpu.VMEM((planes, kc * N), jnp.float32),     # k-invariant base
                        pltpu.VMEM((Cout, N), jnp.float32)],           # shortcut
        compiler_params=pltpu.CompilerParams(
            dimension_semantics=("parallel", "arbitrary")),
    )(nbr_xyz, nbr_f, xyz_b, h, x,
      p["w_nd"], p["w_cd"], p["bxyz"], p["wm1"], p["bm1"], p["wm2"], p["bm2"],
      p["w2"], p["b2"], p["ws"], p["bs"])


def pairwise_knn_scores(xyz, *, row_tile=256):
    """xyz: [B, 3, N] f32 -> [B, N, N] f32 scores 2*x_i.x_j - |x_j|^2 (same per-row
    ordering as the negative squared distance).  Row-tiled over query points; tile kept
    small so the double-buffered output block also fits v7x's 64 MiB VMEM."""
    B, C, N = xyz.shape
    tn = N if N <= row_tile else row_tile
    assert N % tn == 0
    # TODO(synk): for large N, tile the key axis too and fuse a per-row partial top-k so
    #             the full [B,N,N] f32 matrix is never materialized in HBM.
    return pl.pallas_call(
        _pdist_kernel,
        out_shape=jax.ShapeDtypeStruct((B, N, N), jnp.float32),
        grid=(B, N // tn),
        in_specs=[pl.BlockSpec((1, C, tn), lambda b, j: (b, 0, j)),   # query tile
                  pl.BlockSpec((1, C, N), lambda b, j: (b, 0, 0))],   # all points
        out_specs=pl.BlockSpec((1, tn, N), lambda b, j: (b, j, 0)),
        compiler_params=pltpu.CompilerParams(
            dimension_semantics=("parallel", "parallel")),
    )(xyz, xyz)


# ----------------------------------------------------------------------------- XLA glue

def build_lpfa_inputs(xyz, h_bf16, idx):
    """LPFA.group_feature neighbour gathers, laid out [B, C, k*N] (k-major slabs,
    N lane-innermost) in bf16.  xyz: [B,3,N] f32, h: [B,planes,N] bf16, idx: [B,N,k]."""
    B, _, N = xyz.shape
    k = idx.shape[-1]
    xyz_t = jnp.transpose(xyz, (0, 2, 1))                           # [B, N, 3]
    nbr_xyz = jax.vmap(lambda pts, ind: pts[ind])(xyz_t, idx)       # [B, N, k, 3]
    nbr_xyz = jnp.transpose(nbr_xyz, (0, 3, 2, 1))                  # [B, 3, k, N]
    nbr_xyz = nbr_xyz.reshape(B, 3, k * N).astype(jnp.bfloat16)

    h_t = jnp.transpose(h_bf16, (0, 2, 1))                          # [B, N, planes]
    nbr_f = jax.vmap(lambda f, ind: f[ind])(h_t, idx)               # [B, N, k, planes]
    nbr_f = jnp.transpose(nbr_f, (0, 3, 2, 1)).reshape(B, -1, k * N)  # [B, planes, k*N]
    return nbr_xyz, nbr_f.astype(jnp.bfloat16)


# ----------------------------------------------------------------------------- pure-JAX reference (original 9-channel math, same bf16-at-MXU policy)

def ref_conv_bn(w, x, b):
    return jnp.einsum("oc,...cl->...ol", w, x,
                      preferred_element_type=jnp.float32) + b


def ref_pdist(xyz):
    xt = jnp.transpose(xyz, (0, 2, 1))
    inner = jnp.einsum("bnc,bcm->bnm", xt, xyz)
    sq = jnp.sum(xyz ** 2, axis=1, keepdims=True)                   # (B, 1, N)
    return 2.0 * inner - sq - jnp.transpose(sq, (0, 2, 1))


def ref_fused(nbr_xyz, nbr_f, xyz_bf16, h_bf16, x_bf16, p, k):
    """Reference for LPFA + conv2 + shortcut using the ORIGINAL 9-channel pf concat
    and un-split xyz2feature weight (validates the algebraic fold in the kernel)."""
    B, _, KN = nbr_xyz.shape
    N = KN // k
    planes = nbr_f.shape[1]
    ctr = jnp.broadcast_to(xyz_bf16[:, :, None, :], (B, 3, k, N)).reshape(B, 3, KN)
    diff = (nbr_xyz.astype(jnp.float32) - ctr.astype(jnp.float32)).astype(jnp.bfloat16)
    pf9 = jnp.concatenate([ctr, nbr_xyz, diff], axis=1)             # [B, 9, k*N]
    h_rep = jnp.broadcast_to(h_bf16[:, :, None, :],
                             (B, planes, k, N)).reshape(B, planes, KN)
    ft = nbr_f.astype(jnp.float32) - h_rep.astype(jnp.float32)

    g = ref_conv_bn(p["wxyz9"], pf9, p["bxyz"]) + ft
    g = _leaky(g)
    g = _leaky(ref_conv_bn(p["wm1"], g.astype(jnp.bfloat16), p["bm1"]))
    g = _leaky(ref_conv_bn(p["wm2"], g.astype(jnp.bfloat16), p["bm2"]))
    m = g.reshape(B, planes, k, N).mean(axis=2)                     # mean over k
    y = ref_conv_bn(p["w2"], m.astype(jnp.bfloat16), p["b2"])
    sc = ref_conv_bn(p["ws"], x_bf16, p["bs"])
    return _leaky(y + sc)


# ----------------------------------------------------------------------------- parameters

def make_params(key, in_ch, out_ch, planes):
    keys = jax.random.split(key, 12)

    def conv_bn(kw, kbn, cout, cin):
        w = jax.random.normal(kw, (cout, cin), jnp.float32) / jnp.sqrt(float(cin))
        kg, kb = jax.random.split(kbn)
        gamma = 1.0 + 0.1 * jax.random.normal(kg, (cout,), jnp.float32)
        beta = 0.05 * jax.random.normal(kb, (cout,), jnp.float32)
        # eval-mode BatchNorm, running_mean=0, running_var=1, eps=1e-5, folded into w.
        scale = gamma / jnp.sqrt(1.0 + 1e-5)
        return scale[:, None] * w, beta.reshape(cout, 1).astype(jnp.float32)

    p = {}
    w1, p["b1"] = conv_bn(keys[0], keys[1], planes, in_ch)          # conv1
    p["w1"] = w1.astype(jnp.bfloat16)
    w9, p["bxyz"] = conv_bn(keys[2], keys[3], planes, 9)            # LPFA xyz2feature
    p["wxyz9"] = w9.astype(jnp.bfloat16)                            # reference only
    # Algebraic fold: W @ [ctr; nbr; nbr-ctr] == (W_nbr+W_diff)@nbr + (W_ctr-W_diff)@ctr
    p["w_nd"] = (w9[:, 3:6] + w9[:, 6:9]).astype(jnp.bfloat16)
    p["w_cd"] = (w9[:, 0:3] - w9[:, 6:9]).astype(jnp.bfloat16)
    wm1, p["bm1"] = conv_bn(keys[4], keys[5], planes, planes)       # LPFA mlp[0]
    p["wm1"] = wm1.astype(jnp.bfloat16)
    wm2, p["bm2"] = conv_bn(keys[6], keys[7], planes, planes)       # LPFA mlp[1]
    p["wm2"] = wm2.astype(jnp.bfloat16)
    w2, p["b2"] = conv_bn(keys[8], keys[9], out_ch, planes)         # conv2
    p["w2"] = w2.astype(jnp.bfloat16)
    ws, p["bs"] = conv_bn(keys[10], keys[11], out_ch, in_ch)        # shortcut
    p["ws"] = ws.astype(jnp.bfloat16)
    return p


# ----------------------------------------------------------------------------- CIC forward (Pallas path)

def cic_forward_pallas(params, xyz, x_bf16, k, idx):
    """CIC.forward with xyz.shape[-1] == npoint and curve_config=None.
    Returns (xyz, out[B,out_ch,N] bf16, plus intermediates for validation)."""
    # TODO(synk): MaskedMaxPool (FPS + query_ball_point) and the curve branches are
    # not exercised in this configuration (npoint == N, curve_config=None).
    h = conv1_pallas(x_bf16, params["w1"], params["b1"])            # [B, planes, N] bf16
    nbr_xyz, nbr_f = build_lpfa_inputs(xyz, h, idx)                 # [B, C, k*N] bf16
    out = lpfa_conv2_pallas(nbr_xyz, nbr_f, xyz.astype(jnp.bfloat16),
                            h, x_bf16, params, k=k)                 # [B, out_ch, N] bf16
    return xyz, out, h, nbr_xyz, nbr_f


# ----------------------------------------------------------------------------- main

if __name__ == "__main__":
    B, N, k = 2, 128, 16
    in_ch, out_ch, bottleneck = 64, 128, 2
    planes = in_ch // bottleneck
    npoint = N  # xyz.size(-1) == npoint -> maxpool branch skipped, as in PyTorch

    key = jax.random.PRNGKey(0)
    kxyz, kx, kp = jax.random.split(key, 3)
    xyz = jax.random.uniform(kxyz, (B, 3, N), jnp.float32)
    x = jax.random.normal(kx, (B, in_ch, N), jnp.float32)
    x_bf16 = x.astype(jnp.bfloat16)
    params = make_params(kp, in_ch, out_ch, planes)

    # knn: Pallas pairwise-score kernel + top_k index selection in XLA.
    scores = jax.block_until_ready(pairwise_knn_scores(xyz))
    # Validate against the full metric (add back the per-row constant -|q|^2 on host).
    sq_q = jnp.sum(xyz ** 2, axis=1)[:, :, None]                    # (B, N, 1)
    err_d = float(jnp.max(jnp.abs((scores - sq_q) - ref_pdist(xyz))))
    assert err_d < 5e-3, f"pairwise distance mismatch, max_err={err_d}"
    # knn(x, k) computes top-(k+1); CIC keeps the first k (self included).
    idx = jax.lax.top_k(scores, k + 1)[1][:, :, :k]

    # ---- Pallas forward ----
    xyz_out, out, h, nbr_xyz, nbr_f = cic_forward_pallas(params, xyz, x_bf16, k, idx)
    out = jax.block_until_ready(out)

    # ---- validation (reference: original math with the same bf16-at-MXU policy) ----
    h_ref = _leaky(ref_conv_bn(params["w1"], x_bf16, params["b1"]))
    err_h = float(jnp.max(jnp.abs(h.astype(jnp.float32) - h_ref)))
    assert jnp.allclose(h.astype(jnp.float32), h_ref, atol=5e-2, rtol=5e-2), \
        f"conv1 max_err={err_h}"

    out_ref = ref_fused(nbr_xyz, nbr_f, xyz.astype(jnp.bfloat16), h, x_bf16, params, k)
    err_o = float(jnp.max(jnp.abs(out.astype(jnp.float32) - out_ref)))
    assert jnp.allclose(out.astype(jnp.float32), out_ref, atol=1.5e-1, rtol=5e-2), \
        f"fused max_err={err_o}"

    print("KERNEL_OK")
</pallas_src>

<mosaic_0001>
module attributes {stable_mosaic.version = 11 : i64} {
  func.func @_pdist_kernel(%arg0: i32, %arg1: i32, %arg2: memref<1x3x128xf32, #tpu.memory_space<vmem>>, %arg3: memref<1x3x128xf32, #tpu.memory_space<vmem>>, %arg4: memref<1x128x128xf32, #tpu.memory_space<vmem>>) attributes {dimension_semantics = [#tpu.dimension_semantics<parallel>, #tpu.dimension_semantics<parallel>], iteration_bounds = array<i64: 2, 1>, scalar_prefetch = 0 : i64, scratch_operands = 0 : i64, tpu.core_type = #tpu.core_type<tc>, window_params = [{transform_indices = @transform_0, window_bounds = array<i64: 1, 3, 128>}, {transform_indices = @transform_1, window_bounds = array<i64: 1, 3, 128>}, {transform_indices = @transform_2, window_bounds = array<i64: 1, 128, 128>}]} {
    %c0 = arith.constant 0 : index
    %c0_0 = arith.constant 0 : index
    %c0_1 = arith.constant 0 : index
    %0 = vector.load %arg2[%c0, %c0_0, %c0_1] : memref<1x3x128xf32, #tpu.memory_space<vmem>>, vector<1x3x128xf32>
    %1 = vector.shape_cast %0 : vector<1x3x128xf32> to vector<3x128xf32>
    %c0_2 = arith.constant 0 : index
    %c0_3 = arith.constant 0 : index
    %c0_4 = arith.constant 0 : index
    %2 = vector.load %arg3[%c0_2, %c0_3, %c0_4] : memref<1x3x128xf32, #tpu.memory_space<vmem>>, vector<1x3x128xf32>
    %3 = vector.shape_cast %2 : vector<1x3x128xf32> to vector<3x128xf32>
    %cst = arith.constant dense<0.000000e+00> : vector<128x128xf32>
    %4 = tpu.matmul %1, %3, %cst {dimension_numbers = #tpu.dot_dimension_numbers<[0], [0], [1], [1], [0, 1, 1, 1], [], []>} : vector<3x128xf32>, vector<3x128xf32>, vector<128x128xf32> -> vector<128x128xf32>
    %5 = arith.mulf %3, %3 : vector<3x128xf32>
    %cst_5 = arith.constant dense<0.000000e+00> : vector<128xf32>
    %6 = vector.multi_reduction <add>, %5, %cst_5 [0] : vector<3x128xf32> to vector<128xf32>
    %7 = vector.shape_cast %6 : vector<128xf32> to vector<1x128xf32>
    %cst_6 = arith.constant 2.000000e+00 : f32
    %8 = vector.broadcast %cst_6 : f32 to vector<128x128xf32>
    %9 = arith.mulf %8, %4 : vector<128x128xf32>
    %10 = vector.broadcast %7 : vector<1x128xf32> to vector<128x128xf32>
    %11 = arith.subf %9, %10 : vector<128x128xf32>
    %c0_7 = arith.constant 0 : index
    %c0_8 = arith.constant 0 : index
    %c0_9 = arith.constant 0 : index
    %12 = vector.load %arg4[%c0_7, %c0_8, %c0_9] : memref<1x128x128xf32, #tpu.memory_space<vmem>>, vector<1x128x128xf32>
    %13 = vector.shape_cast %12 : vector<1x128x128xf32> to vector<128x128xf32>
    %14 = vector.shape_cast %11 : vector<128x128xf32> to vector<1x128x128xf32>
    tpu.vector_store %arg4[%c0_7, %c0_8, %c0_9], %14 {strides = array<i32>} : memref<1x128x128xf32, #tpu.memory_space<vmem>>, vector<1x128x128xf32>,
    return
  }
  func.func @transform_0(%arg0: i32, %arg1: i32) -> (i32, i32, i32) {
    %c0_i32 = arith.constant 0 : i32
    %c0_i32_0 = arith.constant 0 : i32
    return %arg0, %c0_i32, %arg1 : i32, i32, i32
  }
  func.func @transform_1(%arg0: i32, %arg1: i32) -> (i32, i32, i32) {
    %c0_i32 = arith.constant 0 : i32
    %c0_i32_0 = arith.constant 0 : i32
    %c0_i32_1 = arith.constant 0 : i32
    return %arg0, %c0_i32, %c0_i32_0 : i32, i32, i32
  }
  func.func @transform_2(%arg0: i32, %arg1: i32) -> (i32, i32, i32) {
    %c0_i32 = arith.constant 0 : i32
    %c0_i32_0 = arith.constant 0 : i32
    return %arg0, %arg1, %c0_i32 : i32, i32, i32
  }
}

</mosaic_0001>

<llo_original>
// kernel: tpu_custom_call.1
$region0: #{tpu_custom_call.1}
  #allocation0 [shape = 'u32[]', space=smem, size = 0x4, offset = 0x4, fixed_abs, tag = 'smem constant byte address 0x4 - core index']
  #allocation1 [shape = 'u32[144,128]{1,0:T(1,128)}', space=vmem, size = 0x12000, scoped, tag = 'internal scratch']
  %s0 = inlined_call_operand.vmem [shape: f32[2,3,128], index: 0, kind: input, shape index: {}]
  %s1 = inlined_call_operand.vmem [shape: f32[2,3,128], index: 1, kind: input, shape index: {}]
  %s2 = inlined_call_operand.hbm [shape: f32[2,128,128], index: 2, kind: output, shape index: {}]
  %s3 = sld [smem:[#allocation0]]
  $region41: #{tpu_custom_call.1} parent=0
    _
  %s5 = ssub.s32 1, %s3
  %s6 = scalar_select 0, %s5, %s3
  $region1: #{tpu_custom_call.1} parent=0
    #allocation2 [shape = 'u8[131072]{0}', space=vmem, size = 0x20000, scoped, tag = 'output window, operand 0']
    #allocation3 [shape = 's32[2]{0}', space=sflag, size = 0x8, scoped, tag = 'scoped memory for tpu_custom_call.1']
    %7 = vsyncpa [#allocation3], 0
    %s8 = scalar_lea.sflag [#allocation3], 1
    %9 = vsyncpa %s8, 0
    loop: start=0, step=1, limit=4
    $region2: #{tpu_custom_call.1} parent=1 // loop_pre_header
      _
    $region3: #{tpu_custom_call.1} parent=1 // loop_header
      %s11 = sphi 0, %s15
      %p12 = scmp.ge.s32.totalorder %s11, 4
      %s18 = sphi 0, %s30
      %s19 = sphi 0, %s26
      %s20 = sphi 0, %s18
      %s21 = sphi 0, %s19
      %s22 = sphi 0, %s20
      %s23 = sphi 0, %s21
      %s35 = sphi 0, %s37
      %s38 = sphi 0, %s35
      %s39 = sphi 0, %s38
      %s55 = sphi 0, %s39
      %s61 = sphi 0, %s63
      %s64 = sphi 0, %s61
      %s65 = sphi 0, %s64
      %s81 = sphi 0, %s65
      %s89 = sphi 0, %s91
      %s92 = sphi 0, %s89
      %s93 = sphi 0, %s92
      %s109 = sphi 0, %s93
    $region4: #{tpu_custom_call.1} parent=1 // loop_header_branch
      %14 = sbr.rel (%p12) target = $region8
    $region5: #{tpu_custom_call.1} parent=1 // loop_body
      %s16 = ssub.s32 %s11, 1
      %s17 = ssub.s32 %s11, 2
      %s24 = sadd.s32 1, %s19
      %p25 = scmp.ge.s32.totalorder %s24, 1
      %s26 = scalar_select %p25, 0, %s24
      %s27 = sadd.s32 1, %s18
      %s28 = scalar_select %p25, %s27, %s18
      %p29 = scmp.ge.s32.totalorder %s28, 2
      %s30 = scalar_select %p29, 0, %s28
      %s31 = ssub.s32 %s18, %s30
      %s32 = ssub.s32 %s19, %s26
      %s33 = sor.u32 %s31, %s32
      %p34 = scmp.eq.s32.totalorder %s33, 0
      %s36 = sadd.s32 %s35, 1
      %s37 = scalar_select %p34, %s35, %s36
      %p40 = pneg %p34
      %p41 = scmp.eq.s32.totalorder %s11, 1
      %p42 = por %p40, %p41
      %p43 = scmp.ne.s32.totalorder %s35, %s38
      %p44 = scmp.eq.s32.totalorder %s11, 0
      %p45 = por %p43, %p44
      %p46 = scmp.ne.s32.totalorder %s35, %s38
      %p47 = scmp.eq.s32.totalorder %s16, 1
      %p48 = por %p46, %p47
      %p49 = scmp.ne.s32.totalorder %s38, %s39
      %p50 = scmp.eq.s32.totalorder %s16, 0
      %p51 = por %p49, %p50
      %p52 = scmp.ne.s32.totalorder %s38, %s39
      %p53 = scmp.eq.s32.totalorder %s17, 1
      %p54 = por %p52, %p53
      %p56 = scmp.ne.s32.totalorder %s39, %s55
      %p57 = scmp.eq.s32.totalorder %s17, 0
      %p58 = por %p56, %p57
      %s59 = ssub.s32 %s18, %s30
      %p60 = scmp.eq.s32.totalorder %s59, 0
      %s62 = sadd.s32 %s61, 1
      %s63 = scalar_select %p60, %s61, %s62
      %p66 = pneg %p60
      %p67 = scmp.eq.s32.totalorder %s11, 1
      %p68 = por %p66, %p67
      %p69 = scmp.ne.s32.totalorder %s61, %s64
      %p70 = scmp.eq.s32.totalorder %s11, 0
      %p71 = por %p69, %p70
      %p72 = scmp.ne.s32.totalorder %s61, %s64
      %p73 = scmp.eq.s32.totalorder %s16, 1
      %p74 = por %p72, %p73
      %p75 = scmp.ne.s32.totalorder %s64, %s65
      %p76 = scmp.eq.s32.totalorder %s16, 0
      %p77 = por %p75, %p76
      %p78 = scmp.ne.s32.totalorder %s64, %s65
      %p79 = scmp.eq.s32.totalorder %s17, 1
      %p80 = por %p78, %p79
      %p82 = scmp.ne.s32.totalorder %s65, %s81
      %p83 = scmp.eq.s32.totalorder %s17, 0
      %p84 = por %p82, %p83
      %s85 = ssub.s32 %s18, %s30
      %s86 = ssub.s32 %s19, %s26
      %s87 = sor.u32 %s85, %s86
      %p88 = scmp.eq.s32.totalorder %s87, 0
      %s90 = sadd.s32 %s89, 1
      %s91 = scalar_select %p88, %s89, %s90
      %p94 = pneg %p88
      %p95 = scmp.eq.s32.totalorder %s11, 1
      %p96 = por %p94, %p95
      %p97 = scmp.ne.s32.totalorder %s89, %s92
      %p98 = scmp.eq.s32.totalorder %s11, 0
      %p99 = por %p97, %p98
      %p100 = scmp.ne.s32.totalorder %s89, %s92
      %p101 = scmp.eq.s32.totalorder %s16, 1
      %p102 = por %p100, %p101
      %p103 = scmp.ne.s32.totalorder %s92, %s93
      %p104 = scmp.eq.s32.totalorder %s16, 0
      %p105 = por %p103, %p104
      %p106 = scmp.ne.s32.totalorder %s92, %s93
      %p107 = scmp.eq.s32.totalorder %s17, 1
      %p108 = por %p106, %p107
      %p110 = scmp.ne.s32.totalorder %s93, %s109
      %p111 = scmp.eq.s32.totalorder %s17, 0
      %p112 = por %p110, %p111
      %p113 = scmp.le.s32.totalorder 1, %s11
      %p114 = scmp.lt.s32.totalorder %s11, 3
      %p115 = pnand %p113, %p114
      %p116 = pneg %p115
      // Predicated region
      $region9: #{tpu_custom_call.1} parent=5 // pred_check
        _
      $region10: #{tpu_custom_call.1} parent=5 // pred_check_branch
        %118 = sbr.rel (%p115) target = $region12
      $region11: #{tpu_custom_call.1} parent=5 // pred_region
        %s119 = ssub.s32 %s11, 1
      $region12: #{tpu_custom_call.1} parent=5 // pred_fallthru
        _
      %p120 = scmp.lt.s32.totalorder %s11, 2
      // Predicated region
      $region13: #{tpu_custom_call.1} parent=5 // pred_check
        %p121 = pneg %p120
      $region14: #{tpu_custom_call.1} parent=5 // pred_check_branch
        %123 = sbr.rel (%p121) target = $region16
      $region15: #{tpu_custom_call.1} parent=5 // pred_region
        // Predicated region
        $region17: #{tpu_custom_call.1} parent=15 // pred_check
          %p124 = pneg %p45
        $region18: #{tpu_custom_call.1} parent=15 // pred_check_branch
          %126 = sbr.rel (%p124) target = $region20
        $region19: #{tpu_custom_call.1} parent=15 // pred_region
          %p127 = scmp.lt.s32.totalorder %s18, 1
          %s128 = scalar_select %p127, %s18, 1
          %p129 = scmp.lt.s32.totalorder %s19, 0
          %s130 = scalar_select %p129, %s19, 0
          %s131 = sadd.s32 %s130, %s128
          %s132 = smul.addr %s131, 4
          %s133 = scalar_lea.vmem %s0, %s132
        $region20: #{tpu_custom_call.1} parent=15 // pred_fallthru
          _
        // Predicated region
        $region21: #{tpu_custom_call.1} parent=15 // pred_check
          %p134 = pneg %p71
        $region22: #{tpu_custom_call.1} parent=15 // pred_check_branch
          %136 = sbr.rel (%p134) target = $region24
        $region23: #{tpu_custom_call.1} parent=15 // pred_region
          %p137 = scmp.lt.s32.totalorder %s18, 1
          %s138 = scalar_select %p137, %s18, 1
          %s139 = smul.addr %s138, 4
          %s140 = scalar_lea.vmem %s1, %s139
        $region24: #{tpu_custom_call.1} parent=15 // pred_fallthru
          _
      $region16: #{tpu_custom_call.1} parent=5 // pred_fallthru
        _
      %p141 = scmp.le.s32.totalorder 1, %s11
      %p142 = scmp.lt.s32.totalorder %s11, 3
      %p143 = pnand %p141, %p142
      %p144 = pneg %p143
      // Predicated region
      $region25: #{tpu_custom_call.1} parent=5 // pred_check
        _
      $region26: #{tpu_custom_call.1} parent=5 // pred_check_branch
        %146 = sbr.rel (%p143) target = $region28
      $region27: #{tpu_custom_call.1} parent=5 // pred_region
        %s147 = ssub.s32 %s11, 1
        %p148 = scmp.lt.s32.totalorder %s20, 1
        %s149 = scalar_select %p148, %s20, 1
        %p150 = scmp.lt.s32.totalorder %s21, 0
        %s151 = scalar_select %p150, %s21, 0
        %s152 = sadd.s32 %s151, %s149
        %s153 = smul.addr %s152, 4
        %s154 = scalar_lea.vmem %s0, %s153
        %p155 = pneg %p51
        %p156 = pneg %p48
        %p157 = scmp.lt.s32.totalorder %s20, 1
        %s158 = scalar_select %p157, %s20, 1
        %s159 = smul.addr %s158, 4
        %s160 = scalar_lea.vmem %s1, %s159
        %p161 = pneg %p77
        %p162 = pneg %p74
        %p163 = pneg %p105
        %p164 = pneg %p102
        %s165 = sand.u32 %s92, 1
        %s166 = scalar_lea.sflag [#allocation3], %s165
        %s167 = sand.u32 %s92, 1
        %s168 = smul.addr %s167, 128
        %s169 = scalar_lea.vmem [#allocation2], %s168
        %p170 = scmp.lt.s32.totalorder %s20, 1
        %s171 = scalar_select %p170, %s20, 1
        %p172 = scmp.lt.s32.totalorder %s21, 0
        %s173 = scalar_select %p172, %s21, 0
        %s174 = sadd.s32 %s173, %s171
        %s175 = smul.addr %s174, 4
        %s176 = scalar_lea.vmem %s0, %s175
        %p177 = scmp.lt.s32.totalorder %s20, 1
        %s178 = scalar_select %p177, %s20, 1
        %s179 = smul.addr %s178, 4
        %s180 = scalar_lea.vmem %s1, %s179
        %s181 = smul.u32 16, %s21
        %v182 = vld [vmem:[%s176] sm:$0x7]
        %v183 = vld [vmem:[%s180] sm:$0x7]
        %184 = vxpose.xlu0.b32.start [1/16] %v182, 128
        %185 = vxpose.xlu0.b32.cont [2/16] 0.0, 128
        %186 = vxpose.xlu0.b32.cont [3/16] 0.0, 128
        %187 = vxpose.xlu0.b32.cont [4/16] 0.0, 128
        %188 = vxpose.xlu0.b32.cont [5/16] 0.0, 128
        %189 = vxpose.xlu0.b32.cont [6/16] 0.0, 128
        %190 = vxpose.xlu0.b32.cont [7/16] 0.0, 128
        %191 = vxpose.xlu0.b32.cont [8/16] 0.0, 128
        %192 = vxpose.xlu0.b32.cont [9/16] 0.0, 128
        %193 = vxpose.xlu0.b32.cont [10/16] 0.0, 128
        %194 = vxpose.xlu0.b32.cont [11/16] 0.0, 128
        %195 = vxpose.xlu0.b32.cont [12/16] 0.0, 128
        %196 = vxpose.xlu0.b32.cont [13/16] 0.0, 128
        %197 = vxpose.xlu0.b32.cont [14/16] 0.0, 128
        %198 = vxpose.xlu0.b32.cont [15/16] 0.0, 128
        %199 = vxpose.xlu0.b32.end [16/16] 0.0, 128
        %v200 = vpop.trf.xlu0
        %v201 = vpop.trf.xlu0
        %v202 = vpop.trf.xlu0
        %v203 = vpop.trf.xlu0
        %v204 = vpop.trf.xlu0
        %v205 = vpop.trf.xlu0
        %v206 = vpop.trf.xlu0
        %v207 = vpop.trf.xlu0
        %v208 = vpop.trf.xlu0
        %v209 = vpop.trf.xlu0
        %v210 = vpop.trf.xlu0
        %v211 = vpop.trf.xlu0
        %v212 = vpop.trf.xlu0
        %v213 = vpop.trf.xlu0
        %v214 = vpop.trf.xlu0
        %v215 = vpop.trf.xlu0
        %vm216 = vcmask 23552
        %v218 = vsel %vm216, %v200, 0
        %v221 = vsel %vm216, %v201, 0
        %v224 = vsel %vm216, %v202, 0
        %v227 = vsel %vm216, %v203, 0
        %v230 = vsel %vm216, %v204, 0
        %v233 = vsel %vm216, %v205, 0
        %v236 = vsel %vm216, %v206, 0
        %v239 = vsel %vm216, %v207, 0
        %v242 = vsel %vm216, %v208, 0
        %v245 = vsel %vm216, %v209, 0
        %v248 = vsel %vm216, %v210, 0
        %v251 = vsel %vm216, %v211, 0
        %v254 = vsel %vm216, %v212, 0
        %v257 = vsel %vm216, %v213, 0
        %v260 = vsel %vm216, %v214, 0
        %v263 = vsel %vm216, %v215, 0
        %vm265 = vcmask 1042432
        %v267 = vsel %vm265, %v183, 0
        %269 = vmatprep.subr.mxu0 0.0
        %270 = vmatpush1.msra.mxu0 %v267
        %271 = vmatprep.subr.mxu0 0.0
        %272 = vmatpush1.msra.mxu0 0.0
        %273 = vmatprep.subr.mxu0 0.0
        %274 = vmatpush1.msra.mxu0 0.0
        %275 = vmatprep.subr.mxu0 0.0
        %276 = vmatpush1.msra.mxu0 0.0
        %277 = vmatprep.subr.mxu0 0.0
        %278 = vmatpush1.msra.mxu0 0.0
        %279 = vmatprep.subr.mxu0 0.0
        %280 = vmatpush1.msra.mxu0 0.0
        %281 = vmatprep.subr.mxu0 0.0
        %282 = vmatpush1.msra.mxu0 0.0
        %283 = vmatprep.subr.mxu0 0.0
        %284 = vmatpush1.msra.mxu0 0.0
        %285 = vmatprep.subr.mxu0 0.0
        %286 = vmatpush1.msra.mxu0 0.0
        %287 = vmatprep.subr.mxu0 0.0
        %288 = vmatpush1.msra.mxu0 0.0
        %289 = vmatprep.subr.mxu0 0.0
        %290 = vmatpush1.msra.mxu0 0.0
        %291 = vmatprep.subr.mxu0 0.0
        %292 = vmatpush1.msra.mxu0 0.0
        %293 = vmatprep.subr.mxu0 0.0
        %294 = vmatpush1.msra.mxu0 0.0
        %295 = vmatprep.subr.mxu0 0.0
        %296 = vmatpush1.msra.mxu0 0.0
        %297 = vmatprep.subr.mxu0 0.0
        %298 = vmatpush1.msra.mxu0 0.0
        %299 = vmatprep.subr.mxu0 0.0
        %300 = vmatpush1.msra.mxu0 0.0
        %301 = vmatprep.subr.mxu0 0.0
        %302 = vmatpush1.msra.mxu0 0.0
        %303 = vmatprep.subr.mxu0 0.0
        %304 = vmatpush1.msra.mxu0 0.0
        %305 = vmatprep.subr.mxu0 0.0
        %306 = vmatpush1.msra.mxu0 0.0
        %307 = vmatprep.subr.mxu0 0.0
        %308 = vmatpush1.msra.mxu0 0.0
        %309 = vmatprep.subr.mxu0 0.0
        %310 = vmatpush1.msra.mxu0 0.0
        %311 = vmatprep.subr.mxu0 0.0
        %312 = vmatpush1.msra.mxu0 0.0
        %313 = vmatprep.subr.mxu0 0.0
        %314 = vmatpush1.msra.mxu0 0.0
        %315 = vmatprep.subr.mxu0 0.0
        %316 = vmatpush1.msra.mxu0 0.0
        %317 = vmatprep.subr.mxu0 0.0
        %318 = vmatpush1.msra.mxu0 0.0
        %319 = vmatprep.subr.mxu0 0.0
        %320 = vmatpush1.msra.mxu0 0.0
        %321 = vmatprep.subr.mxu0 0.0
        %322 = vmatpush1.msra.mxu0 0.0
        %323 = vmatprep.subr.mxu0 0.0
        %324 = vmatpush1.msra.mxu0 0.0
        %325 = vmatprep.subr.mxu0 0.0
        %326 = vmatpush1.msra.mxu0 0.0
        %327 = vmatprep.subr.mxu0 0.0
        %328 = vmatpush1.msra.mxu0 0.0
        %329 = vmatprep.subr.mxu0 0.0
        %330 = vmatpush1.msra.mxu0 0.0
        %331 = vmatprep.subr.mxu0 0.0
        %332 = vmatpush1.msra.mxu0 0.0
        %333 = vmatprep.mubr.f32.mxu0 0.0
        %334 = vmatmul.mubr.f32.gmra.mrb[0].mxu0 %v218
        %v335 = vpop.f32.mrb[0].mxu0
        %v336 = vadd.f32 0.0, %v335
        %v337 = vpop.f32.mrb[0].mxu0
        %338 = vmatprep.mubr.f32.mxu0 0.0
        %339 = vmatmul.mubr.f32.gmra.mrb[0].mxu0 %v221
        %v340 = vpop.f32.mrb[0].mxu0
        %v341 = vadd.f32 0.0, %v340
        %v342 = vpop.f32.mrb[0].mxu0
        %343 = vmatprep.mubr.f32.mxu0 0.0
        %344 = vmatmul.mubr.f32.gmra.mrb[0].mxu0 %v224
        %v345 = vpop.f32.mrb[0].mxu0
        %v346 = vadd.f32 0.0, %v345
        %v347 = vpop.f32.mrb[0].mxu0
        %348 = vmatprep.mubr.f32.mxu0 0.0
        %349 = vmatmul.mubr.f32.gmra.mrb[0].mxu0 %v227
        %v350 = vpop.f32.mrb[0].mxu0
        %v351 = vadd.f32 0.0, %v350
        %v352 = vpop.f32.mrb[0].mxu0
        %353 = vmatprep.mubr.f32.mxu0 0.0
        %354 = vmatmul.mubr.f32.gmra.mrb[0].mxu0 %v230
        %v355 = vpop.f32.mrb[0].mxu0
        %v356 = vadd.f32 0.0, %v355
        %v357 = vpop.f32.mrb[0].mxu0
        %358 = vmatprep.mubr.f32.mxu0 0.0
        %359 = vmatmul.mubr.f32.gmra.mrb[0].mxu0 %v233
        %v360 = vpop.f32.mrb[0].mxu0
        %v361 = vadd.f32 0.0, %v360
        %v362 = vpop.f32.mrb[0].mxu0
        %363 = vmatprep.mubr.f32.mxu0 0.0
        %364 = vmatmul.mubr.f32.gmra.mrb[0].mxu0 %v236
        %v365 = vpop.f32.mrb[0].mxu0
        %v366 = vadd.f32 0.0, %v365
        %v367 = vpop.f32.mrb[0].mxu0
        %368 = vmatprep.mubr.f32.mxu0 0.0
        %369 = vmatmul.mubr.f32.gmra.mrb[0].mxu0 %v239
        %v370 = vpop.f32.mrb[0].mxu0
        %v371 = vadd.f32 0.0, %v370
        %v372 = vpop.f32.mrb[0].mxu0
        %373 = vmatprep.mubr.f32.mxu0 0.0
        %374 = vmatmul.mubr.f32.gmra.mrb[0].mxu0 %v242
        %v375 = vpop.f32.mrb[0].mxu0
        %v376 = vadd.f32 0.0, %v375
        %v377 = vpop.f32.mrb[0].mxu0
        %378 = vmatprep.mubr.f32.mxu0 0.0
        %379 = vmatmul.mubr.f32.gmra.mrb[0].mxu0 %v245
        %v380 = vpop.f32.mrb[0].mxu0
        %v381 = vadd.f32 0.0, %v380
        %v382 = vpop.f32.mrb[0].mxu0
        %383 = vmatprep.mubr.f32.mxu0 0.0
        %384 = vmatmul.mubr.f32.gmra.mrb[0].mxu0 %v248
        %v385 = vpop.f32.mrb[0].mxu0
        %v386 = vadd.f32 0.0, %v385
        %v387 = vpop.f32.mrb[0].mxu0
        %388 = vmatprep.mubr.f32.mxu0 0.0
        %389 = vmatmul.mubr.f32.gmra.mrb[0].mxu0 %v251
        %v390 = vpop.f32.mrb[0].mxu0
        %v391 = vadd.f32 0.0, %v390
        %v392 = vpop.f32.mrb[0].mxu0
        %393 = vmatprep.mubr.f32.mxu0 0.0
        %394 = vmatmul.mubr.f32.gmra.mrb[0].mxu0 %v254
        %v395 = vpop.f32.mrb[0].mxu0
        %v396 = vadd.f32 0.0, %v395
        %v397 = vpop.f32.mrb[0].mxu0
        %398 = vmatprep.mubr.f32.mxu0 0.0
        %399 = vmatmul.mubr.f32.gmra.mrb[0].mxu0 %v257
        %v400 = vpop.f32.mrb[0].mxu0
        %v401 = vadd.f32 0.0, %v400
        %v402 = vpop.f32.mrb[0].mxu0
        %403 = vmatprep.mubr.f32.mxu0 0.0
        %404 = vmatmul.mubr.f32.gmra.mrb[0].mxu0 %v260
        %v405 = vpop.f32.mrb[0].mxu0
        %v406 = vadd.f32 0.0, %v405
        %v407 = vpop.f32.mrb[0].mxu0
        %408 = vmatprep.mubr.f32.mxu0 0.0
        %409 = vmatmul.mubr.f32.gmra.mrb[0].mxu0 %v263
        %v410 = vpop.f32.mrb[0].mxu0
        %v411 = vadd.f32 0.0, %v410
        %v412 = vpop.f32.mrb[0].mxu0
        %413 = vdwg.mxu0
        %v414 = vmul.f32 %v183, %v183
        %v415 = vsel %vm265, %v414, 0.0
        %v416 = vrot.slane %v415, 4
        %v417 = vadd.f32 %v415, %v416
        %v418 = vrot.slane %v417, 2
        %v419 = vadd.f32 %v417, %v418
        %v420 = vrot.slane %v419, 1
        %v421 = vadd.f32 %v419, %v420
        %v422 = vmul.f32 %v336, 2.0
        %v423 = vmul.f32 %v341, 2.0
        %v424 = vmul.f32 %v346, 2.0
        %v425 = vmul.f32 %v351, 2.0
        %v426 = vmul.f32 %v356, 2.0
        %v427 = vmul.f32 %v361, 2.0
        %v428 = vmul.f32 %v366, 2.0
        %v429 = vmul.f32 %v371, 2.0
        %v430 = vmul.f32 %v376, 2.0
        %v431 = vmul.f32 %v381, 2.0
        %v432 = vmul.f32 %v386, 2.0
        %v433 = vmul.f32 %v391, 2.0
        %v434 = vmul.f32 %v396, 2.0
        %v435 = vmul.f32 %v401, 2.0
        %v436 = vmul.f32 %v406, 2.0
        %v437 = vmul.f32 %v411, 2.0
        %v438 = vsub.f32 %v422, %v421
        %v439 = vsub.f32 %v423, %v421
        %v440 = vsub.f32 %v424, %v421
        %v441 = vsub.f32 %v425, %v421
        %v442 = vsub.f32 %v426, %v421
        %v443 = vsub.f32 %v427, %v421
        %v444 = vsub.f32 %v428, %v421
        %v445 = vsub.f32 %v429, %v421
        %v446 = vsub.f32 %v430, %v421
        %v447 = vsub.f32 %v431, %v421
        %v448 = vsub.f32 %v432, %v421
        %v449 = vsub.f32 %v433, %v421
        %v450 = vsub.f32 %v434, %v421
        %v451 = vsub.f32 %v435, %v421
        %v452 = vsub.f32 %v436, %v421
        %v453 = vsub.f32 %v437, %v421
        %454 = vst [vmem:[%s169] sm:$0xff] %v438
        %455 = vst [vmem:[%s169 + $0x8] sm:$0xff] %v439
        %456 = vst [vmem:[%s169 + $0x10] sm:$0xff] %v440
        %457 = vst [vmem:[%s169 + $0x18] sm:$0xff] %v441
        %458 = vst [vmem:[%s169 + $0x20] sm:$0xff] %v442
        %459 = vst [vmem:[%s169 + $0x28] sm:$0xff] %v443
        %460 = vst [vmem:[%s169 + $0x30] sm:$0xff] %v444
        %461 = vst [vmem:[%s169 + $0x38] sm:$0xff] %v445
        %462 = vst [vmem:[%s169 + $0x40] sm:$0xff] %v446
        %463 = vst [vmem:[%s169 + $0x48] sm:$0xff] %v447
        %464 = vst [vmem:[%s169 + $0x50] sm:$0xff] %v448
        %465 = vst [vmem:[%s169 + $0x58] sm:$0xff] %v449
        %466 = vst [vmem:[%s169 + $0x60] sm:$0xff] %v450
        %467 = vst [vmem:[%s169 + $0x68] sm:$0xff] %v451
        %468 = vst [vmem:[%s169 + $0x70] sm:$0xff] %v452
        %469 = vst [vmem:[%s169 + $0x78] sm:$0xff] %v453
        %s470 = sand.u32 %s92, 1
        %s471 = scalar_lea.sflag [#allocation3], %s470
        %s472 = sand.u32 %s92, 1
        %s473 = smul.addr %s472, 128
        %s474 = scalar_lea.vmem [#allocation2], %s473
        // Predicated region
        $region29: #{tpu_custom_call.1} parent=27 // pred_check
          %p475 = pneg %p102
        $region30: #{tpu_custom_call.1} parent=27 // pred_check_branch
          %477 = sbr.rel (%p475) target = $region32
        $region31: #{tpu_custom_call.1} parent=27 // pred_region
          %s478 = smul.u32 16, %s21
          %s480 = ssub.s32 2048, 2048
          %481 = vsyncadd %s471, %s480
          %s482 = smul.addr %s20, 16
          %s483 = sadd.s32 %s478, %s482
          %s484 = smul.addr %s483, 128
          %s485 = scalar_lea.hbm %s2, %s484
          %s486 = sshll.u32 %s474, 4
          %s487 = int_to_ptr.vmem [resolvable:$true] %s486
          %492 = dma.vmem_to_hbm [thread:$0]  %s487, 2048, %s485, %s471, 128, 128, 8
        $region32: #{tpu_custom_call.1} parent=27 // pred_fallthru
          _
      $region28: #{tpu_custom_call.1} parent=5 // pred_fallthru
        _
      %p493 = scmp.le.s32.totalorder 2, %s11
      // Predicated region
      $region33: #{tpu_custom_call.1} parent=5 // pred_check
        %p494 = pneg %p493
      $region34: #{tpu_custom_call.1} parent=5 // pred_check_branch
        %496 = sbr.rel (%p494) target = $region36
      $region35: #{tpu_custom_call.1} parent=5 // pred_region
        %s497 = ssub.s32 %s11, 2
        // Predicated region
        $region37: #{tpu_custom_call.1} parent=35 // pred_check
          %p498 = pneg %p108
        $region38: #{tpu_custom_call.1} parent=35 // pred_check_branch
          %500 = sbr.rel (%p498) target = $region40
        $region39: #{tpu_custom_call.1} parent=35 // pred_region
          %s501 = sand.u32 %s93, 1
          %s502 = scalar_lea.sflag [#allocation3], %s501
          %s503 = sand.u32 %s93, 1
          %s504 = smul.addr %s503, 128
          %s505 = scalar_lea.vmem [#allocation2], %s504
          %506 = dma.done %s502, 2048
        $region40: #{tpu_custom_call.1} parent=35 // pred_fallthru
          _
      $region36: #{tpu_custom_call.1} parent=5 // pred_fallthru
        _
    $region6: #{tpu_custom_call.1} parent=1 // loop_footer
      %s15 = sadd.s32 1, %s11
    $region7: #{tpu_custom_call.1} parent=1 // loop_footer_branch
      %10 = sbr.rel target = $region3
    $region8: #{tpu_custom_call.1} parent=1 // loop_exit
      _
    %507 = vsyncpa [#allocation3], 1
    %s508 = scalar_lea.sflag [#allocation3], 1
    %509 = vsyncpa %s508, 1

</llo_original>
